<compile_context>
chip_gen: v6e
topology: v6e:2x2x1
jax: 0.10.0
libtpu: 0.0.40
codegen_flags: <defaults>
</compile_context>

<pallas_src>
import jax
import jax.numpy as jnp
from jax.experimental import pallas as pl
from jax.experimental.pallas import tpu as pltpu


# ----------------------------------------------------------------------------
# helpers
# ----------------------------------------------------------------------------
def _round_up(x: int, m: int) -> int:
    return ((x + m - 1) // m) * m


def _balanced_tile(size: int, max_tile: int, align: int, min_tiles: int = 1):
    """Split `size` (padded up to `align`) into n tiles of equal, aligned size.

    Returns (tile, padded_total, n_tiles) with padded_total = tile * n_tiles.
    """
    padded = _round_up(size, align)
    n = max(min_tiles, -(-padded // min(max_tile, padded)))
    tile = _round_up(-(-padded // n), align)
    n = -(-padded // tile)
    return tile, tile * n, n


def _largest_divisor_tile(total: int, max_tile: int, align: int) -> int:
    """Largest tile = align*d <= max_tile that divides `total` exactly
    (total is already a multiple of `align`). Avoids any per-call re-padding
    of the init-time-padded weight."""
    q = total // align
    dmax = max(1, min(q, max_tile // align))
    for d in range(dmax, 0, -1):
        if q % d == 0:
            return align * d
    return align


def _vmem_limit(working_bytes: int) -> int:
    # Explicit scoped-VMEM limit: covers v5e's 16 MiB default, leaves headroom,
    # stays safely under v7x's 64 MiB physical VMEM.
    return int(min(max(working_bytes + (8 << 20), 16 << 20), 56 << 20))


# ----------------------------------------------------------------------------
# kernels
# ----------------------------------------------------------------------------
def _make_resident_kernel(mxu_dtype):
    """1-D M grid; whole (padded) weight is VMEM-resident; no accumulator."""

    def kernel(x_ref, w_ref, o_ref):
        acc = jnp.dot(
            x_ref[...].astype(mxu_dtype),
            w_ref[...],
            preferred_element_type=jnp.float32,
        )
        o_ref[...] = jax.nn.sigmoid(acc)  # f32 exp -> EUP, exact divide

    return kernel


def _make_reduction_kernel(mxu_dtype):
    """(M, N, K) grid; accumulate directly into the resident f32 output block."""

    def kernel(x_ref, w_ref, o_ref):
        k = pl.program_id(2)

        @pl.when(k == 0)
        def _init():
            o_ref[...] = jnp.zeros_like(o_ref)

        o_ref[...] += jnp.dot(
            x_ref[...].astype(mxu_dtype),
            w_ref[...],
            preferred_element_type=jnp.float32,
        )

        @pl.when(k == pl.num_programs(2) - 1)
        def _finalize():
            o_ref[...] = jax.nn.sigmoid(o_ref[...])

    return kernel


def _broadcast_kernel(x_ref, w_ref, o_ref):
    """input_dim == 1 path: sigmoid(x[:, :1] * w_row) as a VPU broadcast mul."""
    o_ref[...] = jax.nn.sigmoid(x_ref[...] * w_ref[...].astype(jnp.float32))


# ----------------------------------------------------------------------------
# weight packing (done ONCE at init, off the per-call hot path)
# ----------------------------------------------------------------------------
def pack_action_net_weight(weight_t, *, mxu_dtype=jnp.float32):
    """Pack the (input_dim, output_dim) pre-transposed nn.Linear weight:
    zero-pad to lane multiples and cast to the MXU dtype, once.

    Returns (padded_weight, (input_dim, output_dim))."""
    weight_t = jnp.asarray(weight_t, jnp.float32)
    input_dim, output_dim = weight_t.shape
    n_pad = _round_up(output_dim, 128)
    k_pad = 1 if input_dim == 1 else _round_up(input_dim, 128)
    if (k_pad, n_pad) != (input_dim, output_dim):
        weight_t = jnp.pad(
            weight_t, ((0, k_pad - input_dim), (0, n_pad - output_dim))
        )
    return weight_t.astype(mxu_dtype), (input_dim, output_dim)


def init_action_net_weight(key, input_dim, output_dim, a=0.001, b=0.999,
                           *, mxu_dtype=jnp.float32):
    """JAX equivalent of uniform_inverse_logistic_(weight, 0.001, 0.999),
    emitted pre-transposed, pre-padded and pre-cast."""
    u = jax.random.uniform(key, (input_dim, output_dim), dtype=jnp.float32,
                           minval=a, maxval=b)
    w_t = jnp.log(1.0 / (1.0 - u) - 1.0)  # inverse sigmoid
    return pack_action_net_weight(w_t, mxu_dtype=mxu_dtype)


def action_net_weight_from_values(weights, *, mxu_dtype=jnp.float32):
    """Equivalent of the `weights is not None` init path:
    torch weight = inverse_sigmoid(weights)[:, None]  (shape (output_dim, 1)),
    packed here pre-transposed as (1, output_dim)."""
    w = jnp.asarray(weights, dtype=jnp.float32)
    w_t = jnp.log(1.0 / (1.0 - w) - 1.0)[None, :]
    return pack_action_net_weight(w_t, mxu_dtype=mxu_dtype)


# ----------------------------------------------------------------------------
# forward
# ----------------------------------------------------------------------------
def action_net_forward(x, packed_weight, *, tm=512, tn=512, tk=1024,
                       resident_weight_bytes=4 << 20,
                       xla_fallback_max_elems=1 << 15,
                       force_pallas=False):
    """Pallas implementation of ActionNet.forward: sigmoid(x @ W^T).

    Args:
      x:             (batch, input_dim) array.
      packed_weight: output of init_action_net_weight / pack_action_net_weight /
                     action_net_weight_from_values.
    Returns:
      (batch, output_dim) float32.
    """
    w_p, (input_dim, output_dim) = packed_weight
    x = jnp.asarray(x, jnp.float32)
    batch = x.shape[0]
    assert x.shape[1] == input_dim, "x must be (batch, input_dim)"

    # --- tiny-problem fallback: XLA fusion beats any kernel launch here. -----
    if (not force_pallas) and batch * input_dim * output_dim <= xla_fallback_max_elems:
        w_log = w_p[:input_dim, :output_dim].astype(jnp.float32)
        return jax.nn.sigmoid(x @ w_log)

    # --- input_dim == 1: VPU broadcast multiply, no MXU, no K padding. -------
    if input_dim == 1:
        n_pad = w_p.shape[1]
        min_m_tiles = 2 if _round_up(batch, 8) >= 256 else 1
        tm_, M, n_m = _balanced_tile(batch, tm, 8, min_tiles=min_m_tiles)
        x_p = jnp.pad(x, ((0, M - batch), (0, 0))) if M != batch else x
        out = pl.pallas_call(
            _broadcast_kernel,
            out_shape=jax.ShapeDtypeStruct((M, n_pad), jnp.float32),
            grid=(n_m,),
            in_specs=[
                pl.BlockSpec((tm_, 1), lambda i: (i, 0)),
                pl.BlockSpec((1, n_pad), lambda i: (0, 0)),
            ],
            out_specs=pl.BlockSpec((tm_, n_pad), lambda i: (i, 0)),
            compiler_params=pltpu.CompilerParams(
                dimension_semantics=("parallel",)),
        )(x_p, w_p)
        return out[:batch, :output_dim]

    # --- matmul paths ---------------------------------------------------------
    k_pad, n_pad = w_p.shape
    w_itemsize = jnp.dtype(w_p.dtype).itemsize
    x_itemsize = 4  # x is streamed as f32
    mxu_dtype = w_p.dtype  # MXU precision chosen once, at weight-pack time
    w_bytes = k_pad * n_pad * w_itemsize

    if w_bytes <= resident_weight_bytes:
        # 1-D grid over M; weight stays VMEM-resident; no reduction axis,
        # no accumulator scratch, no init/finalize.
        min_m_tiles = 2 if _round_up(batch, 8) >= 256 else 1
        tm_, M, n_m = _balanced_tile(batch, tm, 8, min_tiles=min_m_tiles)
        x_p = x
        if (M, k_pad) != (batch, input_dim):
            x_p = jnp.pad(x, ((0, M - batch), (0, k_pad - input_dim)))

        working = (2 * tm_ * k_pad * x_itemsize
                   + 2 * k_pad * n_pad * w_itemsize
                   + 2 * tm_ * n_pad * 4)
        out = pl.pallas_call(
            _make_resident_kernel(mxu_dtype),
            out_shape=jax.ShapeDtypeStruct((M, n_pad), jnp.float32),
            grid=(n_m,),
            in_specs=[
                pl.BlockSpec((tm_, k_pad), lambda i: (i, 0)),
                pl.BlockSpec((k_pad, n_pad), lambda i: (0, 0)),
            ],
            out_specs=pl.BlockSpec((tm_, n_pad), lambda i: (i, 0)),
            compiler_params=pltpu.CompilerParams(
                dimension_semantics=("parallel",),
                vmem_limit_bytes=_vmem_limit(working)),
            cost_estimate=pl.CostEstimate(
                flops=2 * M * n_pad * k_pad,
                transcendentals=M * n_pad,
                bytes_accessed=(M * k_pad * x_itemsize
                                + k_pad * n_pad * w_itemsize
                                + M * n_pad * 4)),
        )(x_p, w_p)
        return out[:batch, :output_dim]

    # Large weight: (M, N, K) grid, accumulate directly into the resident f32
    # output block (no scratch), sigmoid in place at k == last.
    tn_ = _largest_divisor_tile(n_pad, tn, 128)
    tk_ = _largest_divisor_tile(k_pad, tk, 128)
    n_n = n_pad // tn_
    n_k = k_pad // tk_
    min_m_tiles = 2 if (n_n == 1 and _round_up(batch, 8) >= 256) else 1
    tm_, M, n_m = _balanced_tile(batch, tm, 8, min_tiles=min_m_tiles)

    x_p = x
    if (M, k_pad) != (batch, input_dim):
        x_p = jnp.pad(x, ((0, M - batch), (0, k_pad - input_dim)))

    working = (2 * tm_ * tk_ * x_itemsize
               + 2 * tk_ * tn_ * w_itemsize
               + 2 * tm_ * tn_ * 4)
    out = pl.pallas_call(
        _make_reduction_kernel(mxu_dtype),
        out_shape=jax.ShapeDtypeStruct((M, n_pad), jnp.float32),
        grid=(n_m, n_n, n_k),
        in_specs=[
            pl.BlockSpec((tm_, tk_), lambda i, j, k: (i, k)),
            pl.BlockSpec((tk_, tn_), lambda i, j, k: (k, j)),
        ],
        out_specs=pl.BlockSpec((tm_, tn_), lambda i, j, k: (i, j)),
        compiler_params=pltpu.CompilerParams(
            dimension_semantics=("parallel", "parallel", "arbitrary"),
            vmem_limit_bytes=_vmem_limit(working)),
        cost_estimate=pl.CostEstimate(
            flops=2 * M * n_pad * k_pad,
            transcendentals=M * n_pad,
            bytes_accessed=(M * k_pad * x_itemsize
                            + k_pad * n_pad * w_itemsize
                            + M * n_pad * 4)),
    )(x_p, w_p)
    return out[:batch, :output_dim]


# ----------------------------------------------------------------------------
# demo / correctness check
# ----------------------------------------------------------------------------
if __name__ == "__main__":
    key = jax.random.PRNGKey(0)
    k_w, k_x, k_v, k_x1, k_w3, k_x3 = jax.random.split(key, 6)

    # 1) Random-init path (uniform_inverse_logistic_): batch=2, in=32, out=16.
    #    Forced through the Pallas resident-weight kernel.
    batch, d_in, d_out = 2, 32, 16
    packed = init_action_net_weight(k_w, d_in, d_out)
    x = jax.random.normal(k_x, (batch, d_in), dtype=jnp.float32)
    out = jax.block_until_ready(action_net_forward(x, packed, force_pallas=True))
    w_log = packed[0][:d_in, :d_out].astype(jnp.float32)
    ref = jax.nn.sigmoid(x @ w_log)
    assert out.shape == (batch, d_out)
    assert jnp.allclose(out, ref, atol=1e-4, rtol=1e-4)

    #    Tiny-shape XLA fallback (default dispatch) agrees too.
    out_fb = jax.block_until_ready(action_net_forward(x, packed))
    assert jnp.allclose(out_fb, ref, atol=1e-5, rtol=1e-5)

    # 2) `weights is not None` path: input_dim == 1, VPU broadcast kernel.
    vals = jax.random.uniform(k_v, (d_out,), minval=0.05, maxval=0.95)
    packed1 = action_net_weight_from_values(vals)
    x1 = jax.random.normal(k_x1, (4, 1), dtype=jnp.float32)
    out1 = jax.block_until_ready(action_net_forward(x1, packed1, force_pallas=True))
    ref1 = jax.nn.sigmoid(x1 @ packed1[0][:1, :d_out])
    assert out1.shape == (4, d_out)
    assert jnp.allclose(out1, ref1, atol=1e-5, rtol=1e-5)

    # 3) Multi-tile K-reduction path (forced with small tiles) to exercise the
    #    accumulate-into-output kernel at a modest shape.
    b3, di3, do3 = 64, 384, 256
    packed3 = init_action_net_weight(k_w3, di3, do3)
    x3 = jax.random.normal(k_x3, (b3, di3), dtype=jnp.float32)
    out3 = jax.block_until_ready(action_net_forward(
        x3, packed3, tm=64, tn=256, tk=128,
        resident_weight_bytes=0, force_pallas=True))
    ref3 = jax.nn.sigmoid(x3 @ packed3[0][:di3, :do3].astype(jnp.float32))
    assert out3.shape == (b3, do3)
    assert jnp.allclose(out3, ref3, atol=2e-4, rtol=2e-4)

    print("KERNEL_OK")
</pallas_src>

<mosaic_0001>
module attributes {stable_mosaic.version = 11 : i64} {
  func.func @kernel(%arg0: i32, %arg1: memref<8x128xf32, #tpu.memory_space<vmem>>, %arg2: memref<128x128xf32, #tpu.memory_space<vmem>>, %arg3: memref<8x128xf32, #tpu.memory_space<vmem>>) attributes {dimension_semantics = [#tpu.dimension_semantics<parallel>], iteration_bounds = array<i64: 1>, scalar_prefetch = 0 : i64, scratch_operands = 0 : i64, tpu.core_type = #tpu.core_type<tc>, window_params = [{transform_indices = @transform_0, window_bounds = array<i64: 8, 128>}, {pipeline_mode = #tpu.pipeline_mode<synchronous>, transform_indices = @transform_1, window_bounds = array<i64: 128, 128>}, {transform_indices = @transform_2, window_bounds = array<i64: 8, 128>}]} {
    %c0 = arith.constant 0 : index
    %c0_0 = arith.constant 0 : index
    %0 = vector.load %arg1[%c0, %c0_0] : memref<8x128xf32, #tpu.memory_space<vmem>>, vector<8x128xf32>
    %c0_1 = arith.constant 0 : index
    %c0_2 = arith.constant 0 : index
    %1 = vector.load %arg2[%c0_1, %c0_2] : memref<128x128xf32, #tpu.memory_space<vmem>>, vector<128x128xf32>
    %cst = arith.constant dense<0.000000e+00> : vector<8x128xf32>
    %2 = tpu.matmul %0, %1, %cst {dimension_numbers = #tpu.dot_dimension_numbers<[1], [0], [0], [1], [0, 0, 1, 1], [], []>} : vector<8x128xf32>, vector<128x128xf32>, vector<8x128xf32> -> vector<8x128xf32>
    %3 = arith.negf %2 : vector<8x128xf32>
    %4 = math.exp %3 : vector<8x128xf32>
    %cst_3 = arith.constant 1.000000e+00 : f32
    %5 = vector.broadcast %cst_3 : f32 to vector<8x128xf32>
    %6 = arith.addf %5, %4 : vector<8x128xf32>
    %7 = arith.divf %5, %6 : vector<8x128xf32>
    %c0_4 = arith.constant 0 : index
    %c0_5 = arith.constant 0 : index
    %8 = vector.load %arg3[%c0_4, %c0_5] : memref<8x128xf32, #tpu.memory_space<vmem>>, vector<8x128xf32>
    tpu.vector_store %arg3[%c0_4, %c0_5], %7 {strides = array<i32>} : memref<8x128xf32, #tpu.memory_space<vmem>>, vector<8x128xf32>,
    return
  }
  func.func @transform_0(%arg0: i32) -> (i32, i32) {
    %c0_i32 = arith.constant 0 : i32
    %c0_i32_0 = arith.constant 0 : i32
    return %arg0, %c0_i32 : i32, i32
  }
  func.func @transform_1(%arg0: i32) -> (i32, i32) {
    %c0_i32 = arith.constant 0 : i32
    %c0_i32_0 = arith.constant 0 : i32
    %c0_i32_1 = arith.constant 0 : i32
    return %c0_i32, %c0_i32_0 : i32, i32
  }
  func.func @transform_2(%arg0: i32) -> (i32, i32) {
    %c0_i32 = arith.constant 0 : i32
    %c0_i32_0 = arith.constant 0 : i32
    return %arg0, %c0_i32 : i32, i32
  }
}

</mosaic_0001>

<llo_original>
// kernel: tpu_custom_call.1
$region0: #{tpu_custom_call.1}
  #allocation0 [shape = 'u32[]', space=smem, size = 0x4, offset = 0x4, fixed_abs, tag = 'smem constant byte address 0x4 - core index']
  #allocation1 [shape = 'u32[144,128]{1,0:T(1,128)}', space=vmem, size = 0x12000, scoped, tag = 'internal scratch']
  %s0 = inlined_call_operand.hbm [shape: f32[8,128], index: 0, kind: input, shape index: {}]
  %s1 = inlined_call_operand.hbm [shape: f32[128,128], index: 1, kind: input, shape index: {}]
  %s2 = inlined_call_operand.hbm [shape: f32[8,128], index: 2, kind: output, shape index: {}]
  %s3 = sld [smem:[#allocation0]]
  $region26: #{tpu_custom_call.1} parent=0
    _
  %s5 = ssub.s32 1, %s3
  %s6 = scalar_select 0, %s5, %s3
  $region1: #{tpu_custom_call.1} parent=0
    #allocation2 [shape = 'u8[4096]{0}', space=vmem, size = 0x1000, scoped, tag = 'input window, operand 0, single buffered']
    #allocation3 [shape = 's32[1]{0}', space=sflag, size = 0x4, scoped, tag = 'scoped memory for tpu_custom_call.1']
    #allocation4 [shape = 's32[1]{0}', space=sflag, size = 0x4, scoped, tag = 'scoped memory for tpu_custom_call.1']
    #allocation5 [shape = 'u8[65536]{0}', space=vmem, size = 0x10000, scoped, tag = 'input window, operand 1, single buffered']
    #allocation6 [shape = 's32[1]{0}', space=sflag, size = 0x4, scoped, tag = 'scoped memory for tpu_custom_call.1']
    #allocation7 [shape = 'u8[4096]{0}', space=vmem, size = 0x1000, scoped, tag = 'output window, operand 0, single buffered']
    %7 = vsyncpa [#allocation3], 0
    %8 = vsyncpa [#allocation6], 0
    %9 = vsyncpa [#allocation4], 0
    // Predicated region
    $region2: #{tpu_custom_call.1} parent=1 // pred_check
      _
    $region3: #{tpu_custom_call.1} parent=1 // pred_check_branch
      %11 = sbr.rel (0) target = $region5
    $region4: #{tpu_custom_call.1} parent=1 // pred_region
      %s13 = ssub.s32 128, 128
      %14 = vsyncadd [#allocation3], %s13
      %s16 = sshll.u32 [#allocation2], 4
      %s17 = int_to_ptr.vmem [resolvable:$true] %s16
      %19 = dma.hbm_to_vmem [thread:$0]  %s0, 128, %s17, [#allocation3]
    $region5: #{tpu_custom_call.1} parent=1 // pred_fallthru
      _
    // Predicated region
    $region6: #{tpu_custom_call.1} parent=1 // pred_check
      _
    $region7: #{tpu_custom_call.1} parent=1 // pred_check_branch
      %21 = sbr.rel (0) target = $region9
    $region8: #{tpu_custom_call.1} parent=1 // pred_region
      %s23 = ssub.s32 2048, 2048
      %24 = vsyncadd [#allocation6], %s23
      %s25 = sshll.u32 [#allocation5], 4
      %s26 = int_to_ptr.vmem [resolvable:$true] %s25
      %31 = dma.hbm_to_vmem [thread:$0]  %s1, 2048, %s26, [#allocation6], 128, 128, 8
    $region9: #{tpu_custom_call.1} parent=1 // pred_fallthru
      _
    // Predicated region
    $region10: #{tpu_custom_call.1} parent=1 // pred_check
      _
    $region11: #{tpu_custom_call.1} parent=1 // pred_check_branch
      %33 = sbr.rel (0) target = $region13
    $region12: #{tpu_custom_call.1} parent=1 // pred_region
      %34 = dma.done [#allocation3], 128
    $region13: #{tpu_custom_call.1} parent=1 // pred_fallthru
      _
    // Predicated region
    $region14: #{tpu_custom_call.1} parent=1 // pred_check
      _
    $region15: #{tpu_custom_call.1} parent=1 // pred_check_branch
      %36 = sbr.rel (0) target = $region17
    $region16: #{tpu_custom_call.1} parent=1 // pred_region
      %37 = dma.done [#allocation6], 2048
    $region17: #{tpu_custom_call.1} parent=1 // pred_fallthru
      _
    %v38 = vld [vmem:[#allocation2] sm:$0xff]
    %v39 = vld [vmem:[#allocation5] sm:$0xff]
    %v40 = vld [vmem:[#allocation5 + $0x8] sm:$0xff]
    %v41 = vld [vmem:[#allocation5 + $0x10] sm:$0xff]
    %v42 = vld [vmem:[#allocation5 + $0x18] sm:$0xff]
    %v43 = vld [vmem:[#allocation5 + $0x20] sm:$0xff]
    %v44 = vld [vmem:[#allocation5 + $0x28] sm:$0xff]
    %v45 = vld [vmem:[#allocation5 + $0x30] sm:$0xff]
    %v46 = vld [vmem:[#allocation5 + $0x38] sm:$0xff]
    %v47 = vld [vmem:[#allocation5 + $0x40] sm:$0xff]
    %v48 = vld [vmem:[#allocation5 + $0x48] sm:$0xff]
    %v49 = vld [vmem:[#allocation5 + $0x50] sm:$0xff]
    %v50 = vld [vmem:[#allocation5 + $0x58] sm:$0xff]
    %v51 = vld [vmem:[#allocation5 + $0x60] sm:$0xff]
    %v52 = vld [vmem:[#allocation5 + $0x68] sm:$0xff]
    %v53 = vld [vmem:[#allocation5 + $0x70] sm:$0xff]
    %v54 = vld [vmem:[#allocation5 + $0x78] sm:$0xff]
    %55 = vmatprep.subr.mxu0 0.0
    %56 = vmatpush1.msra.mxu0 %v54
    %57 = vmatprep.subr.mxu0 0.0
    %58 = vmatpush1.msra.mxu0 %v53
    %59 = vmatprep.subr.mxu0 0.0
    %60 = vmatpush1.msra.mxu0 %v52
    %61 = vmatprep.subr.mxu0 0.0
    %62 = vmatpush1.msra.mxu0 %v51
    %63 = vmatprep.subr.mxu0 0.0
    %64 = vmatpush1.msra.mxu0 %v50
    %65 = vmatprep.subr.mxu0 0.0
    %66 = vmatpush1.msra.mxu0 %v49
    %67 = vmatprep.subr.mxu0 0.0
    %68 = vmatpush1.msra.mxu0 %v48
    %69 = vmatprep.subr.mxu0 0.0
    %70 = vmatpush1.msra.mxu0 %v47
    %71 = vmatprep.subr.mxu0 0.0
    %72 = vmatpush1.msra.mxu0 %v46
    %73 = vmatprep.subr.mxu0 0.0
    %74 = vmatpush1.msra.mxu0 %v45
    %75 = vmatprep.subr.mxu0 0.0
    %76 = vmatpush1.msra.mxu0 %v44
    %77 = vmatprep.subr.mxu0 0.0
    %78 = vmatpush1.msra.mxu0 %v43
    %79 = vmatprep.subr.mxu0 0.0
    %80 = vmatpush1.msra.mxu0 %v42
    %81 = vmatprep.subr.mxu0 0.0
    %82 = vmatpush1.msra.mxu0 %v41
    %83 = vmatprep.subr.mxu0 0.0
    %84 = vmatpush1.msra.mxu0 %v40
    %85 = vmatprep.subr.mxu0 0.0
    %86 = vmatpush1.msra.mxu0 %v39
    %87 = vmatprep.subr.mxu0 0.0
    %88 = vmatpush2.msra.mxu0 0.0
    %89 = vmatprep.subr.mxu0 0.0
    %90 = vmatpush2.msra.mxu0 0.0
    %91 = vmatprep.subr.mxu0 0.0
    %92 = vmatpush2.msra.mxu0 0.0
    %93 = vmatprep.subr.mxu0 0.0
    %94 = vmatpush2.msra.mxu0 0.0
    %95 = vmatprep.subr.mxu0 0.0
    %96 = vmatpush2.msra.mxu0 0.0
    %97 = vmatprep.subr.mxu0 0.0
    %98 = vmatpush2.msra.mxu0 0.0
    %99 = vmatprep.subr.mxu0 0.0
    %100 = vmatpush2.msra.mxu0 0.0
    %101 = vmatprep.subr.mxu0 0.0
    %102 = vmatpush2.msra.mxu0 0.0
    %103 = vmatprep.subr.mxu0 0.0
    %104 = vmatpush2.msra.mxu0 0.0
    %105 = vmatprep.subr.mxu0 0.0
    %106 = vmatpush2.msra.mxu0 0.0
    %107 = vmatprep.subr.mxu0 0.0
    %108 = vmatpush2.msra.mxu0 0.0
    %109 = vmatprep.subr.mxu0 0.0
    %110 = vmatpush2.msra.mxu0 0.0
    %111 = vmatprep.subr.mxu0 0.0
    %112 = vmatpush2.msra.mxu0 0.0
    %113 = vmatprep.subr.mxu0 0.0
    %114 = vmatpush2.msra.mxu0 0.0
    %115 = vmatprep.subr.mxu0 0.0
    %116 = vmatpush2.msra.mxu0 0.0
    %117 = vmatprep.subr.mxu0 0.0
    %118 = vmatpush2.msra.mxu0 0.0
    %119 = vmatprep.mubr.f32.mxu0 0.0
    %120 = vmatmul.mubr.f32.gmra.mxu0 %v38
    %v121 = vpop.f32.mrf.mxu0
    %v122 = vadd.f32 0.0, %v121
    %v123 = vpop.f32.mrf.mxu0
    %124 = vdwg.mxu0
    %v125 = vxor.u32 %v122, 2147483648
    %v126 = vmul.f32 %v125, 1.442695
    %v127 = vpow.pop %v126
    %v128 = vadd.f32 %v127, 1.0
    %v129 = vrcp.pop %v128
    %v130 = vmul.f32 1.0, %v129
    %131 = vst [vmem:[#allocation7] sm:$0xff] %v130
    // Predicated region
    $region18: #{tpu_custom_call.1} parent=1 // pred_check
      _
    $region19: #{tpu_custom_call.1} parent=1 // pred_check_branch
      %133 = sbr.rel (0) target = $region21
    $region20: #{tpu_custom_call.1} parent=1 // pred_region
      %s135 = ssub.s32 128, 128
      %136 = vsyncadd [#allocation4], %s135
      %s138 = sshll.u32 [#allocation7], 4
      %s139 = int_to_ptr.vmem [resolvable:$true] %s138
      %141 = dma.vmem_to_hbm [thread:$0]  %s139, 128, %s2, [#allocation4]
    $region21: #{tpu_custom_call.1} parent=1 // pred_fallthru
      _
    // Predicated region
    $region22: #{tpu_custom_call.1} parent=1 // pred_check
      _
    $region23: #{tpu_custom_call.1} parent=1 // pred_check_branch
      %143 = sbr.rel (0) target = $region25
    $region24: #{tpu_custom_call.1} parent=1 // pred_region
      %144 = dma.done [#allocation4], 128
    $region25: #{tpu_custom_call.1} parent=1 // pred_fallthru
      _
    %145 = vsyncpa [#allocation3], 1
    %146 = vsyncpa [#allocation6], 1
    %147 = vsyncpa [#allocation4], 1

</llo_original>
